<compile_context>
chip_gen: v5e
topology: v5e:2x2
jax: 0.10.0
libtpu: 0.0.40
codegen_flags: <defaults>
</compile_context>

<pallas_src>
from functools import partial

import jax
import jax.numpy as jnp
from jax.experimental import pallas as pl
from jax.experimental.pallas import tpu as pltpu

_LANE = 128


# ---------------------------------------------------------------------------
# Generation-aware VMEM limit / tile sizing
# ---------------------------------------------------------------------------
def _pick_vmem_limit():
    """Scoped-VMEM ceiling: raise it on 128-MiB parts, keep headroom on 64-MiB."""
    try:
        cap = int(pltpu.get_tpu_info().vmem_capacity_bytes)
    except Exception:
        cap = 0
    if cap >= (128 << 20):       # v5e / v6e
        return 96 << 20
    if cap >= (64 << 20):        # v7x
        return 40 << 20
    return 32 << 20              # conservative fallback


def _spatial_tile(C, S, itemsize, *, per_block_bytes, n_streams, budget_bytes):
    """Largest lane-dense (multiple-of-128) spatial tile fitting the VMEM budget.

    n_streams = number of (1, C, T) arrays streamed per grid step, each of
    which the pipeline double-buffers.
    """
    row_bytes = C * itemsize
    if 2 * n_streams * row_bytes * _LANE > budget_bytes:
        # Robustness guard from the review: C is never tiled here.
        raise ValueError(
            f"SELayer Pallas kernel: C={C} is too large for an untiled-channel "
            f"(1, C, 128) block within the VMEM budget; add C tiling.")
    t = min(per_block_bytes // row_bytes,
            budget_bytes // (2 * n_streams * row_bytes))
    t = max((t // _LANE) * _LANE, _LANE)
    if t >= S:
        return S                 # one block spanning all of S (legal: full dim)
    return t


# ---------------------------------------------------------------------------
# Kernels
# ---------------------------------------------------------------------------
def _fused_kernel(x_ref, w1_ref, b1_ref, w2_ref, b2_ref, o_ref, *, inv_s):
    """Per-batch fused path: mean + MLP + scale with the (C, S) slice resident."""
    x = x_ref[...]                                                    # (1, C, S)
    # Channel axis stays on sublanes throughout (column-vector MLP): no relayout.
    y = jnp.sum(x.astype(jnp.float32), axis=-1, keepdims=True)[0] * inv_s   # (C, 1)
    h = jnp.maximum(
        jnp.dot(w1_ref[...], y, preferred_element_type=jnp.float32) + b1_ref[...],
        0.0)                                                          # (Cr, 1)
    g = jax.nn.sigmoid(
        jnp.dot(w2_ref[...], h, preferred_element_type=jnp.float32) + b2_ref[...])  # (C, 1)
    o_ref[...] = (x * g[None].astype(x.dtype)).astype(o_ref.dtype)


def _pool_gate_kernel(x_ref, w1_ref, b1_ref, w2_ref, b2_ref, g_ref, acc_ref,
                      *, inv_s, n_s, valid_last):
    """Pass 1: f32 spatial-sum accumulation + fused excitation MLP at finalize."""
    s_idx = pl.program_id(1)

    @pl.when(s_idx == 0)
    def _init():
        acc_ref[...] = jnp.zeros_like(acc_ref)

    xv = x_ref[...].astype(jnp.float32)                               # (1, C, T)

    if valid_last == xv.shape[-1]:
        # S divides the tile evenly: no masking anywhere.
        acc_ref[...] += jnp.sum(xv, axis=-1, keepdims=True)
    else:
        @pl.when(s_idx < n_s - 1)
        def _full_tile():
            acc_ref[...] += jnp.sum(xv, axis=-1, keepdims=True)

        @pl.when(s_idx == n_s - 1)
        def _ragged_tile():
            # OOB reads past S are unspecified -> mask them out of the sum.
            col = jax.lax.broadcasted_iota(jnp.int32, xv.shape, 2)
            acc_ref[...] += jnp.sum(jnp.where(col < valid_last, xv, 0.0),
                                    axis=-1, keepdims=True)

    @pl.when(s_idx == n_s - 1)
    def _finalize():
        # Tiny MLP (way below any MXU tile) fused here: no extra pallas_call,
        # no HBM round-trip for pooled/gates.  Channel stays on sublanes.
        y = acc_ref[0] * inv_s                                        # (C, 1)
        h = jnp.maximum(
            jnp.dot(w1_ref[...], y, preferred_element_type=jnp.float32) + b1_ref[...],
            0.0)                                                      # (Cr, 1)
        g = jax.nn.sigmoid(
            jnp.dot(w2_ref[...], h, preferred_element_type=jnp.float32) + b2_ref[...])
        g_ref[...] = g[None].astype(g_ref.dtype)                      # (1, C, 1)


def _scale_kernel(x_ref, g_ref, o_ref):
    """Pass 2: broadcast per-channel gate over the spatial tile (pure VPU)."""
    o_ref[...] = (x_ref[...] * g_ref[...]).astype(o_ref.dtype)


# ---------------------------------------------------------------------------
# Wrapper
# ---------------------------------------------------------------------------
def se_layer(x, w1, b1, w2, b2, *, force_tiled=False, spatial_tile=None):
    """Squeeze-and-Excitation forward.

    x:  (B, C, D, H, W)
    w1: (Cr, C), b1: (Cr,)   -- first nn.Linear (PyTorch layout)
    w2: (C, Cr), b2: (C,)    -- second nn.Linear (PyTorch layout)
    spatial_tile: optional multiple-of-128 tile override (testing/tuning only).
    """
    B, C, D, H, W = x.shape
    Cr = w1.shape[0]
    S = D * H * W
    inv_s = 1.0 / float(S)
    itemsize = x.dtype.itemsize

    xf = x.reshape(B, C, S)                       # free reshape (contiguous dims)
    # Excitation params as f32 column vectors: channel axis on sublanes.
    w1f = w1.astype(jnp.float32)
    w2f = w2.astype(jnp.float32)
    b1c = b1.reshape(Cr, 1).astype(jnp.float32)
    b2c = b2.reshape(C, 1).astype(jnp.float32)

    vmem_limit = _pick_vmem_limit()
    weight_specs_fused = [
        pl.BlockSpec((Cr, C), lambda b: (0, 0)),
        pl.BlockSpec((Cr, 1), lambda b: (0, 0)),
        pl.BlockSpec((C, Cr), lambda b: (0, 0)),
        pl.BlockSpec((C, 1), lambda b: (0, 0)),
    ]

    # ---- fused per-batch path: 2x-traffic floor, single pallas_call ----------
    # in + out double-buffered blocks, plus the in-kernel f32 temp for the sum.
    fused_bytes = 4 * C * S * itemsize + C * S * 4
    if not force_tiled and fused_bytes <= (vmem_limit * 3) // 4:
        out = pl.pallas_call(
            partial(_fused_kernel, inv_s=inv_s),
            out_shape=jax.ShapeDtypeStruct((B, C, S), x.dtype),
            grid_spec=pltpu.PrefetchScalarGridSpec(
                num_scalar_prefetch=0,
                grid=(B,),
                in_specs=[pl.BlockSpec((1, C, S), lambda b: (b, 0, 0))]
                         + weight_specs_fused,
                out_specs=pl.BlockSpec((1, C, S), lambda b: (b, 0, 0)),
            ),
            compiler_params=pltpu.CompilerParams(
                dimension_semantics=("parallel",),
                vmem_limit_bytes=vmem_limit,
            ),
        )(xf, w1f, b1c, w2f, b2c)
        return out.reshape(B, C, D, H, W)

    # ---- general tiled two-pass path ------------------------------------------
    budget = max(vmem_limit - (4 << 20), 8 << 20)
    if spatial_tile is not None:
        t_pool = t_scale = spatial_tile if spatial_tile < S else S
    else:
        # Pool pass streams only x (its output is a resident (1,C,1) block),
        # so it can afford ~2x bigger tiles than the scale pass.
        t_pool = _spatial_tile(C, S, itemsize, per_block_bytes=8 << 20,
                               n_streams=1, budget_bytes=budget)
        t_scale = _spatial_tile(C, S, itemsize, per_block_bytes=4 << 20,
                                n_streams=2, budget_bytes=budget)

    # Pass 1: per-(batch, channel) mean + excitation MLP -> gates in x.dtype.
    # No jnp.pad: grid is cdiv(S, T) and the ragged last tile is masked in-kernel.
    n_s_pool = pl.cdiv(S, t_pool)
    valid_last = S - (n_s_pool - 1) * t_pool
    gates = pl.pallas_call(
        partial(_pool_gate_kernel, inv_s=inv_s, n_s=n_s_pool, valid_last=valid_last),
        out_shape=jax.ShapeDtypeStruct((B, C, 1), x.dtype),
        grid_spec=pltpu.PrefetchScalarGridSpec(
            num_scalar_prefetch=0,
            grid=(B, n_s_pool),
            in_specs=[
                pl.BlockSpec((1, C, t_pool), lambda b, s: (b, 0, s)),
                pl.BlockSpec((Cr, C), lambda b, s: (0, 0)),
                pl.BlockSpec((Cr, 1), lambda b, s: (0, 0)),
                pl.BlockSpec((C, Cr), lambda b, s: (0, 0)),
                pl.BlockSpec((C, 1), lambda b, s: (0, 0)),
            ],
            out_specs=pl.BlockSpec((1, C, 1), lambda b, s: (b, 0, 0)),
            scratch_shapes=[pltpu.VMEM((1, C, 1), jnp.float32)],
        ),
        compiler_params=pltpu.CompilerParams(
            dimension_semantics=("parallel", "arbitrary"),
            vmem_limit_bytes=vmem_limit,
        ),
    )(xf, w1f, b1c, w2f, b2c)

    # Pass 2: re-stream x and apply the gate.  No mask needed: OOB stores of the
    # ragged last block are dropped and the garbage read past S never lands.
    n_s_scale = pl.cdiv(S, t_scale)
    out = pl.pallas_call(
        _scale_kernel,
        out_shape=jax.ShapeDtypeStruct((B, C, S), x.dtype),
        grid_spec=pltpu.PrefetchScalarGridSpec(
            num_scalar_prefetch=0,
            grid=(B, n_s_scale),
            in_specs=[
                pl.BlockSpec((1, C, t_scale), lambda b, s: (b, 0, s)),
                pl.BlockSpec((1, C, 1), lambda b, s: (b, 0, 0)),
            ],
            out_specs=pl.BlockSpec((1, C, t_scale), lambda b, s: (b, 0, s)),
        ),
        compiler_params=pltpu.CompilerParams(
            dimension_semantics=("parallel", "parallel"),
            vmem_limit_bytes=vmem_limit,
        ),
    )(xf, gates)
    return out.reshape(B, C, D, H, W)


def se_layer_ref(x, w1, b1, w2, b2):
    y = jnp.mean(x, axis=(2, 3, 4))                        # (B, C)
    h = jnp.maximum(y @ w1.T + b1, 0.0)
    s = jax.nn.sigmoid(h @ w2.T + b2)
    return x * s[:, :, None, None, None]


# ---------------------------------------------------------------------------
if __name__ == "__main__":
    # Module config: channel=32, reduction=16 -> hidden = 2
    B, C, D, H, W = 2, 32, 4, 4, 4
    reduction = 16
    Cr = C // reduction

    key = jax.random.PRNGKey(0)
    kx, kw1, kb1, kw2, kb2 = jax.random.split(key, 5)

    x = jax.random.normal(kx, (B, C, D, H, W), dtype=jnp.float32)
    # PyTorch nn.Linear layout: W1 (Cr, C), W2 (C, Cr).
    w1 = jax.random.normal(kw1, (Cr, C), dtype=jnp.float32) * 0.1
    b1 = jax.random.normal(kb1, (Cr,), dtype=jnp.float32) * 0.1
    w2 = jax.random.normal(kw2, (C, Cr), dtype=jnp.float32) * 0.1
    b2 = jax.random.normal(kb2, (C,), dtype=jnp.float32) * 0.1

    ref = se_layer_ref(x, w1, b1, w2, b2)

    # 1) Fused per-batch path (auto-selected for these shapes).
    out_fused = jax.block_until_ready(se_layer(x, w1, b1, w2, b2))
    assert out_fused.shape == x.shape
    assert jnp.allclose(out_fused, ref, atol=1e-5, rtol=1e-5)

    # 2) Tiled two-pass path on the same input (single spatial block, S=64).
    out_tiled = jax.block_until_ready(se_layer(x, w1, b1, w2, b2, force_tiled=True))
    assert jnp.allclose(out_tiled, ref, atol=1e-5, rtol=1e-5)

    # 3) Tiled path, multiple tiles with a ragged (masked) last tile:
    #    S = 5*10*13 = 650, forced 128-wide tiles -> 6 tiles, last has 10 valid.
    x2 = jax.random.normal(kx, (2, C, 5, 10, 13), dtype=jnp.float32)
    ref2 = se_layer_ref(x2, w1, b1, w2, b2)
    out2 = jax.block_until_ready(
        se_layer(x2, w1, b1, w2, b2, force_tiled=True, spatial_tile=128))
    assert jnp.allclose(out2, ref2, atol=1e-5, rtol=1e-5)

    # 4) Tiled path, lane-aligned S with multiple full tiles (no mask branch):
    #    S = 16*16*8 = 2048, 512-wide tiles -> 4 full tiles, B=1.
    x3 = jax.random.normal(kx, (1, C, 16, 16, 8), dtype=jnp.float32)
    ref3 = se_layer_ref(x3, w1, b1, w2, b2)
    out3 = jax.block_until_ready(
        se_layer(x3, w1, b1, w2, b2, force_tiled=True, spatial_tile=512))
    assert jnp.allclose(out3, ref3, atol=1e-5, rtol=1e-5)

    print("KERNEL_OK")
</pallas_src>

<mosaic_0001>
module attributes {stable_mosaic.version = 11 : i64} {
  func.func @_fused_kernel(%arg0: i32, %arg1: memref<1x32x64xf32, #tpu.memory_space<vmem>>, %arg2: memref<2x32xf32, #tpu.memory_space<vmem>>, %arg3: memref<2x1xf32, #tpu.memory_space<vmem>>, %arg4: memref<32x2xf32, #tpu.memory_space<vmem>>, %arg5: memref<32x1xf32, #tpu.memory_space<vmem>>, %arg6: memref<1x32x64xf32, #tpu.memory_space<vmem>>) attributes {dimension_semantics = [#tpu.dimension_semantics<parallel>], iteration_bounds = array<i64: 2>, scalar_prefetch = 0 : i64, scratch_operands = 0 : i64, tpu.core_type = #tpu.core_type<tc>, window_params = [{transform_indices = @transform_0, window_bounds = array<i64: 1, 32, 64>}, {pipeline_mode = #tpu.pipeline_mode<synchronous>, transform_indices = @transform_1, window_bounds = array<i64: 2, 32>}, {pipeline_mode = #tpu.pipeline_mode<synchronous>, transform_indices = @transform_2, window_bounds = array<i64: 2, 1>}, {pipeline_mode = #tpu.pipeline_mode<synchronous>, transform_indices = @transform_3, window_bounds = array<i64: 32, 2>}, {pipeline_mode = #tpu.pipeline_mode<synchronous>, transform_indices = @transform_4, window_bounds = array<i64: 32, 1>}, {transform_indices = @transform_5, window_bounds = array<i64: 1, 32, 64>}]} {
    %c0 = arith.constant 0 : index
    %c0_0 = arith.constant 0 : index
    %c0_1 = arith.constant 0 : index
    %0 = vector.load %arg1[%c0, %c0_0, %c0_1] : memref<1x32x64xf32, #tpu.memory_space<vmem>>, vector<1x32x64xf32>
    %cst = arith.constant dense<0.000000e+00> : vector<1x32xf32>
    %1 = vector.multi_reduction <add>, %0, %cst [2] : vector<1x32x64xf32> to vector<1x32xf32>
    %2 = vector.shape_cast %1 : vector<1x32xf32> to vector<1x32x1xf32>
    %3 = vector.shape_cast %2 : vector<1x32x1xf32> to vector<32x1xf32>
    %cst_2 = arith.constant 1.562500e-02 : f32
    %4 = vector.broadcast %cst_2 : f32 to vector<32x1xf32>
    %5 = arith.mulf %3, %4 : vector<32x1xf32>
    %c0_3 = arith.constant 0 : index
    %c0_4 = arith.constant 0 : index
    %6 = vector.load %arg2[%c0_3, %c0_4] : memref<2x32xf32, #tpu.memory_space<vmem>>, vector<2x32xf32>
    %cst_5 = arith.constant dense<0.000000e+00> : vector<2x1xf32>
    %7 = tpu.matmul %6, %5, %cst_5 {dimension_numbers = #tpu.dot_dimension_numbers<[1], [0], [0], [1], [0, 0, 1, 1], [], []>} : vector<2x32xf32>, vector<32x1xf32>, vector<2x1xf32> -> vector<2x1xf32>
    %c0_6 = arith.constant 0 : index
    %c0_7 = arith.constant 0 : index
    %8 = vector.load %arg3[%c0_6, %c0_7] : memref<2x1xf32, #tpu.memory_space<vmem>>, vector<2x1xf32>
    %9 = arith.addf %7, %8 : vector<2x1xf32>
    %cst_8 = arith.constant 0.000000e+00 : f32
    %10 = vector.broadcast %cst_8 : f32 to vector<2x1xf32>
    %11 = arith.maximumf %9, %10 : vector<2x1xf32>
    %c0_9 = arith.constant 0 : index
    %c0_10 = arith.constant 0 : index
    %12 = vector.load %arg4[%c0_9, %c0_10] : memref<32x2xf32, #tpu.memory_space<vmem>>, vector<32x2xf32>
    %cst_11 = arith.constant dense<0.000000e+00> : vector<32x1xf32>
    %13 = tpu.matmul %12, %11, %cst_11 {dimension_numbers = #tpu.dot_dimension_numbers<[1], [0], [0], [1], [0, 0, 1, 1], [], []>} : vector<32x2xf32>, vector<2x1xf32>, vector<32x1xf32> -> vector<32x1xf32>
    %c0_12 = arith.constant 0 : index
    %c0_13 = arith.constant 0 : index
    %14 = vector.load %arg5[%c0_12, %c0_13] : memref<32x1xf32, #tpu.memory_space<vmem>>, vector<32x1xf32>
    %15 = arith.addf %13, %14 : vector<32x1xf32>
    %16 = arith.negf %15 : vector<32x1xf32>
    %17 = math.exp %16 : vector<32x1xf32>
    %cst_14 = arith.constant 1.000000e+00 : f32
    %18 = vector.broadcast %cst_14 : f32 to vector<32x1xf32>
    %19 = arith.addf %18, %17 : vector<32x1xf32>
    %20 = arith.divf %18, %19 : vector<32x1xf32>
    %21 = vector.shape_cast %20 : vector<32x1xf32> to vector<1x32x1xf32>
    %22 = vector.broadcast %21 : vector<1x32x1xf32> to vector<1x32x64xf32>
    %23 = arith.mulf %0, %22 : vector<1x32x64xf32>
    %c0_15 = arith.constant 0 : index
    %c0_16 = arith.constant 0 : index
    %c0_17 = arith.constant 0 : index
    %24 = vector.load %arg6[%c0_15, %c0_16, %c0_17] : memref<1x32x64xf32, #tpu.memory_space<vmem>>, vector<1x32x64xf32>
    tpu.vector_store %arg6[%c0_15, %c0_16, %c0_17], %23 {strides = array<i32>} : memref<1x32x64xf32, #tpu.memory_space<vmem>>, vector<1x32x64xf32>,
    return
  }
  func.func @transform_0(%arg0: i32) -> (i32, i32, i32) {
    %c0_i32 = arith.constant 0 : i32
    %c0_i32_0 = arith.constant 0 : i32
    %c0_i32_1 = arith.constant 0 : i32
    return %arg0, %c0_i32, %c0_i32_0 : i32, i32, i32
  }
  func.func @transform_1(%arg0: i32) -> (i32, i32) {
    %c0_i32 = arith.constant 0 : i32
    %c0_i32_0 = arith.constant 0 : i32
    %c0_i32_1 = arith.constant 0 : i32
    return %c0_i32, %c0_i32_0 : i32, i32
  }
  func.func @transform_2(%arg0: i32) -> (i32, i32) {
    %c0_i32 = arith.constant 0 : i32
    %c0_i32_0 = arith.constant 0 : i32
    %c0_i32_1 = arith.constant 0 : i32
    return %c0_i32, %c0_i32_0 : i32, i32
  }
  func.func @transform_3(%arg0: i32) -> (i32, i32) {
    %c0_i32 = arith.constant 0 : i32
    %c0_i32_0 = arith.constant 0 : i32
    %c0_i32_1 = arith.constant 0 : i32
    return %c0_i32, %c0_i32_0 : i32, i32
  }
  func.func @transform_4(%arg0: i32) -> (i32, i32) {
    %c0_i32 = arith.constant 0 : i32
    %c0_i32_0 = arith.constant 0 : i32
    %c0_i32_1 = arith.constant 0 : i32
    return %c0_i32, %c0_i32_0 : i32, i32
  }
  func.func @transform_5(%arg0: i32) -> (i32, i32, i32) {
    %c0_i32 = arith.constant 0 : i32
    %c0_i32_0 = arith.constant 0 : i32
    %c0_i32_1 = arith.constant 0 : i32
    return %arg0, %c0_i32, %c0_i32_0 : i32, i32, i32
  }
}

</mosaic_0001>

<llo_original>
// kernel: tpu_custom_call.1
$region0: #{tpu_custom_call.1}
  #allocation0 [shape = 'u32[]', space=smem, size = 0x4, offset = 0x4, fixed_abs, tag = 'smem constant byte address 0x4 - core index']
  #allocation1 [shape = 'u32[72,128]{1,0:T(1,128)}', space=vmem, size = 0x9000, scoped, tag = 'internal scratch']
  %s0 = inlined_call_operand.vmem [shape: f32[2,32,64], index: 0, kind: input, shape index: {}]
  %s1 = inlined_call_operand.vmem [shape: f32[2,32], index: 1, kind: input, shape index: {}]
  %s2 = inlined_call_operand.vmem [shape: f32[2,1], index: 2, kind: input, shape index: {}]
  %s3 = inlined_call_operand.vmem [shape: f32[32,2], index: 3, kind: input, shape index: {}]
  %s4 = inlined_call_operand.vmem [shape: f32[32,1], index: 4, kind: input, shape index: {}]
  %s5 = inlined_call_operand.hbm [shape: f32[2,32,64], index: 5, kind: output, shape index: {}]
  %s6 = sld [smem:[#allocation0]]
  $region53: #{tpu_custom_call.1} parent=0
    _
  %s8 = ssub.s32 1, %s6
  %s9 = scalar_select 0, %s8, %s6
  $region1: #{tpu_custom_call.1} parent=0
    #allocation2 [shape = 'u8[32768]{0}', space=vmem, size = 0x8000, scoped, tag = 'output window, operand 0']
    #allocation3 [shape = 's32[2]{0}', space=sflag, size = 0x8, scoped, tag = 'scoped memory for tpu_custom_call.1']
    %10 = vsyncpa [#allocation3], 0
    %s11 = scalar_lea.sflag [#allocation3], 1
    %12 = vsyncpa %s11, 0
    loop: start=0, step=1, limit=4
    $region2: #{tpu_custom_call.1} parent=1 // loop_pre_header
      _
    $region3: #{tpu_custom_call.1} parent=1 // loop_header
      %s14 = sphi 0, %s18
      %p15 = scmp.ge.s32.totalorder %s14, 4
      %s24 = sphi 0, %s26
      %s27 = sphi 0, %s24
      %s28 = sphi 0, %s27
      %s44 = sphi 0, %s28
      %s48 = sphi 0, %s48
      %s50 = sphi 0, %s48
      %s51 = sphi 0, %s50
      %s65 = sphi 0, %s51
      %s69 = sphi 0, %s69
      %s71 = sphi 0, %s69
      %s72 = sphi 0, %s71
      %s86 = sphi 0, %s72
      %s90 = sphi 0, %s90
      %s92 = sphi 0, %s90
      %s93 = sphi 0, %s92
      %s107 = sphi 0, %s93
      %s111 = sphi 0, %s111
      %s113 = sphi 0, %s111
      %s114 = sphi 0, %s113
      %s128 = sphi 0, %s114
      %s134 = sphi 0, %s136
      %s137 = sphi 0, %s134
      %s138 = sphi 0, %s137
      %s154 = sphi 0, %s138
    $region4: #{tpu_custom_call.1} parent=1 // loop_header_branch
      %17 = sbr.rel (%p15) target = $region8
    $region5: #{tpu_custom_call.1} parent=1 // loop_body
      %s19 = ssub.s32 %s14, 1
      %s20 = ssub.s32 %s14, 2
      %s21 = sadd.s32 %s14, 1
      %s22 = ssub.s32 %s14, %s21
      %p23 = scmp.eq.s32.totalorder %s22, 0
      %s25 = sadd.s32 %s24, 1
      %s26 = scalar_select %p23, %s24, %s25
      %p29 = pneg %p23
      %p30 = scmp.eq.s32.totalorder %s14, 1
      %p31 = por %p29, %p30
      %p32 = scmp.ne.s32.totalorder %s24, %s27
      %p33 = scmp.eq.s32.totalorder %s14, 0
      %p34 = por %p32, %p33
      %p35 = scmp.ne.s32.totalorder %s24, %s27
      %p36 = scmp.eq.s32.totalorder %s19, 1
      %p37 = por %p35, %p36
      %p38 = scmp.ne.s32.totalorder %s27, %s28
      %p39 = scmp.eq.s32.totalorder %s19, 0
      %p40 = por %p38, %p39
      %p41 = scmp.ne.s32.totalorder %s27, %s28
      %p42 = scmp.eq.s32.totalorder %s20, 1
      %p43 = por %p41, %p42
      %p45 = scmp.ne.s32.totalorder %s28, %s44
      %p46 = scmp.eq.s32.totalorder %s20, 0
      %p47 = por %p45, %p46
      %s49 = sadd.s32 %s48, 1
      %p52 = scmp.eq.s32.totalorder %s14, 1
      %p53 = scmp.ne.s32.totalorder %s48, %s50
      %p54 = scmp.eq.s32.totalorder %s14, 0
      %p55 = por %p53, %p54
      %p56 = scmp.ne.s32.totalorder %s48, %s50
      %p57 = scmp.eq.s32.totalorder %s19, 1
      %p58 = por %p56, %p57
      %p59 = scmp.ne.s32.totalorder %s50, %s51
      %p60 = scmp.eq.s32.totalorder %s19, 0
      %p61 = por %p59, %p60
      %p62 = scmp.ne.s32.totalorder %s50, %s51
      %p63 = scmp.eq.s32.totalorder %s20, 1
      %p64 = por %p62, %p63
      %p66 = scmp.ne.s32.totalorder %s51, %s65
      %p67 = scmp.eq.s32.totalorder %s20, 0
      %p68 = por %p66, %p67
      %s70 = sadd.s32 %s69, 1
      %p73 = scmp.eq.s32.totalorder %s14, 1
      %p74 = scmp.ne.s32.totalorder %s69, %s71
      %p75 = scmp.eq.s32.totalorder %s14, 0
      %p76 = por %p74, %p75
      %p77 = scmp.ne.s32.totalorder %s69, %s71
      %p78 = scmp.eq.s32.totalorder %s19, 1
      %p79 = por %p77, %p78
      %p80 = scmp.ne.s32.totalorder %s71, %s72
      %p81 = scmp.eq.s32.totalorder %s19, 0
      %p82 = por %p80, %p81
      %p83 = scmp.ne.s32.totalorder %s71, %s72
      %p84 = scmp.eq.s32.totalorder %s20, 1
      %p85 = por %p83, %p84
      %p87 = scmp.ne.s32.totalorder %s72, %s86
      %p88 = scmp.eq.s32.totalorder %s20, 0
      %p89 = por %p87, %p88
      %s91 = sadd.s32 %s90, 1
      %p94 = scmp.eq.s32.totalorder %s14, 1
      %p95 = scmp.ne.s32.totalorder %s90, %s92
      %p96 = scmp.eq.s32.totalorder %s14, 0
      %p97 = por %p95, %p96
      %p98 = scmp.ne.s32.totalorder %s90, %s92
      %p99 = scmp.eq.s32.totalorder %s19, 1
      %p100 = por %p98, %p99
      %p101 = scmp.ne.s32.totalorder %s92, %s93
      %p102 = scmp.eq.s32.totalorder %s19, 0
      %p103 = por %p101, %p102
      %p104 = scmp.ne.s32.totalorder %s92, %s93
      %p105 = scmp.eq.s32.totalorder %s20, 1
      %p106 = por %p104, %p105
      %p108 = scmp.ne.s32.totalorder %s93, %s107
      %p109 = scmp.eq.s32.totalorder %s20, 0
      %p110 = por %p108, %p109
      %s112 = sadd.s32 %s111, 1
      %p115 = scmp.eq.s32.totalorder %s14, 1
      %p116 = scmp.ne.s32.totalorder %s111, %s113
      %p117 = scmp.eq.s32.totalorder %s14, 0
      %p118 = por %p116, %p117
      %p119 = scmp.ne.s32.totalorder %s111, %s113
      %p120 = scmp.eq.s32.totalorder %s19, 1
      %p121 = por %p119, %p120
      %p122 = scmp.ne.s32.totalorder %s113, %s114
      %p123 = scmp.eq.s32.totalorder %s19, 0
      %p124 = por %p122, %p123
      %p125 = scmp.ne.s32.totalorder %s113, %s114
      %p126 = scmp.eq.s32.totalorder %s20, 1
      %p127 = por %p125, %p126
      %p129 = scmp.ne.s32.totalorder %s114, %s128
      %p130 = scmp.eq.s32.totalorder %s20, 0
      %p131 = por %p129, %p130
      %s132 = ssub.s32 %s14, %s21
      %p133 = scmp.eq.s32.totalorder %s132, 0
      %s135 = sadd.s32 %s134, 1
      %s136 = scalar_select %p133, %s134, %s135
      %p139 = pneg %p133
      %p140 = scmp.eq.s32.totalorder %s14, 1
      %p141 = por %p139, %p140
      %p142 = scmp.ne.s32.totalorder %s134, %s137
      %p143 = scmp.eq.s32.totalorder %s14, 0
      %p144 = por %p142, %p143
      %p145 = scmp.ne.s32.totalorder %s134, %s137
      %p146 = scmp.eq.s32.totalorder %s19, 1
      %p147 = por %p145, %p146
      %p148 = scmp.ne.s32.totalorder %s137, %s138
      %p149 = scmp.eq.s32.totalorder %s19, 0
      %p150 = por %p148, %p149
      %p151 = scmp.ne.s32.totalorder %s137, %s138
      %p152 = scmp.eq.s32.totalorder %s20, 1
      %p153 = por %p151, %p152
      %p155 = scmp.ne.s32.totalorder %s138, %s154
      %p156 = scmp.eq.s32.totalorder %s20, 0
      %p157 = por %p155, %p156
      %p158 = scmp.le.s32.totalorder 1, %s14
      %p159 = scmp.lt.s32.totalorder %s14, 3
      %p160 = pnand %p158, %p159
      %p161 = pneg %p160
      // Predicated region
      $region9: #{tpu_custom_call.1} parent=5 // pred_check
        _
      $region10: #{tpu_custom_call.1} parent=5 // pred_check_branch
        %163 = sbr.rel (%p160) target = $region12
      $region11: #{tpu_custom_call.1} parent=5 // pred_region
        %s164 = ssub.s32 %s14, 1
        // Predicated region
        $region13: #{tpu_custom_call.1} parent=11 // pred_check
          %p165 = pneg %p61
        $region14: #{tpu_custom_call.1} parent=11 // pred_check_branch
          %167 = sbr.rel (%p165) target = $region16
        $region15: #{tpu_custom_call.1} parent=11 // pred_region
          _
        $region16: #{tpu_custom_call.1} parent=11 // pred_fallthru
          _
        // Predicated region
        $region17: #{tpu_custom_call.1} parent=11 // pred_check
          %p168 = pneg %p82
        $region18: #{tpu_custom_call.1} parent=11 // pred_check_branch
          %170 = sbr.rel (%p168) target = $region20
        $region19: #{tpu_custom_call.1} parent=11 // pred_region
          _
        $region20: #{tpu_custom_call.1} parent=11 // pred_fallthru
          _
        // Predicated region
        $region21: #{tpu_custom_call.1} parent=11 // pred_check
          %p171 = pneg %p103
        $region22: #{tpu_custom_call.1} parent=11 // pred_check_branch
          %173 = sbr.rel (%p171) target = $region24
        $region23: #{tpu_custom_call.1} parent=11 // pred_region
          _
        $region24: #{tpu_custom_call.1} parent=11 // pred_fallthru
          _
        // Predicated region
        $region25: #{tpu_custom_call.1} parent=11 // pred_check
          %p174 = pneg %p124
        $region26: #{tpu_custom_call.1} parent=11 // pred_check_branch
          %176 = sbr.rel (%p174) target = $region28
        $region27: #{tpu_custom_call.1} parent=11 // pred_region
          _
        $region28: #{tpu_custom_call.1} parent=11 // pred_fallthru
          _
      $region12: #{tpu_custom_call.1} parent=5 // pred_fallthru
        _
      %p177 = scmp.lt.s32.totalorder %s14, 2
      // Predicated region
      $region29: #{tpu_custom_call.1} parent=5 // pred_check
        %p178 = pneg %p177
      $region30: #{tpu_custom_call.1} parent=5 // pred_check_branch
        %180 = sbr.rel (%p178) target = $region32
      $region31: #{tpu_custom_call.1} parent=5 // pred_region
        // Predicated region
        $region33: #{tpu_custom_call.1} parent=31 // pred_check
          %p181 = pneg %p34
        $region34: #{tpu_custom_call.1} parent=31 // pred_check_branch
          %183 = sbr.rel (%p181) target = $region36
        $region35: #{tpu_custom_call.1} parent=31 // pred_region
          %p184 = scmp.lt.s32.totalorder %s14, 1
          %s185 = scalar_select %p184, %s14, 1
          %s186 = smul.addr %s185, 4
          %s187 = smul.addr %s186, 8
          %s188 = scalar_lea.vmem %s0, %s187
        $region36: #{tpu_custom_call.1} parent=31 // pred_fallthru
          _
      $region32: #{tpu_custom_call.1} parent=5 // pred_fallthru
        _
      %p189 = scmp.le.s32.totalorder 1, %s14
      %p190 = scmp.lt.s32.totalorder %s14, 3
      %p191 = pnand %p189, %p190
      %p192 = pneg %p191
      // Predicated region
      $region37: #{tpu_custom_call.1} parent=5 // pred_check
        _
      $region38: #{tpu_custom_call.1} parent=5 // pred_check_branch
        %194 = sbr.rel (%p191) target = $region40
      $region39: #{tpu_custom_call.1} parent=5 // pred_region
        %s195 = ssub.s32 %s14, 1
        %p196 = scmp.lt.s32.totalorder %s19, 1
        %s197 = scalar_select %p196, %s19, 1
        %s198 = smul.addr %s197, 4
        %s199 = smul.addr %s198, 8
        %s200 = scalar_lea.vmem %s0, %s199
        %p201 = pneg %p40
        %p202 = pneg %p37
        %p203 = pneg %p61
        %p204 = pneg %p58
        %p205 = pneg %p82
        %p206 = pneg %p79
        %p207 = pneg %p103
        %p208 = pneg %p100
        %p209 = pneg %p124
        %p210 = pneg %p121
        %p211 = pneg %p150
        %p212 = pneg %p147
        %s213 = sand.u32 %s137, 1
        %s214 = scalar_lea.sflag [#allocation3], %s213
        %s215 = sand.u32 %s137, 1
        %s216 = smul.addr %s215, 32
        %s217 = scalar_lea.vmem [#allocation2], %s216
        %p218 = scmp.lt.s32.totalorder %s19, 1
        %s219 = scalar_select %p218, %s19, 1
        %s220 = smul.addr %s219, 4
        %s221 = smul.addr %s220, 8
        %s222 = scalar_lea.vmem %s0, %s221
        %v223 = vld [vmem:[%s222] sm:$0xff]
        %v224 = vld [vmem:[%s222 + $0x8] sm:$0xff]
        %v225 = vld [vmem:[%s222 + $0x10] sm:$0xff]
        %v226 = vld [vmem:[%s222 + $0x18] sm:$0xff]
        %vm227 = vcmask 523264
        %v228 = vsel %vm227, %v223, 0.0
        %229 = vadd.xlane.f32.xlu0 %v228
        %v230 = vpop.xlane.xlu0 %229
        %v231 = vsel %vm227, %v224, 0.0
        %232 = vadd.xlane.f32.xlu0 %v231
        %v233 = vpop.xlane.xlu0 %232
        %v234 = vsel %vm227, %v225, 0.0
        %235 = vadd.xlane.f32.xlu0 %v234
        %v236 = vpop.xlane.xlu0 %235
        %v237 = vsel %vm227, %v226, 0.0
        %238 = vadd.xlane.f32.xlu0 %v237
        %v239 = vpop.xlane.xlu0 %238
        %v240 = vmul.f32 %v230, 0.015625
        %v241 = vmul.f32 %v233, 0.015625
        %v242 = vmul.f32 %v236, 0.015625
        %v243 = vmul.f32 %v239, 0.015625
        %v244 = vld [vmem:[%s1] sm:$0x3]
        %v245 = vld [vmem:[%s2] sm:$0x3]
        %vm246 = vcmask 261120
        %v248 = vsel %vm246, %v244, 0
        %250 = vmatpush.msra.mxu0 0.0
        %251 = vmatpush.msra.mxu0 0.0
        %252 = vmatpush.msra.mxu0 0.0
        %253 = vmatpush.msra.mxu0 0.0
        %254 = vmatpush.msra.mxu0 0.0
        %255 = vmatpush.msra.mxu0 0.0
        %256 = vmatpush.msra.mxu0 0.0
        %257 = vmatpush.msra.mxu0 0.0
        %258 = vmatpush.msra.mxu0 0.0
        %259 = vmatpush.msra.mxu0 0.0
        %260 = vmatpush.msra.mxu0 0.0
        %261 = vmatpush.msra.mxu0 0.0
        %262 = vmatpush.msra.mxu0 %v243
        %263 = vmatpush.msra.mxu0 %v242
        %264 = vmatpush.msra.mxu0 %v241
        %265 = vmatpush.msra.mxu0 %v240
        %266 = vmatmul.f32.gmra.mxu0 %v248
        %v267 = vpop.f32.mrf.mxu0
        %v268 = vadd.f32 %v245, %v267
        %269 = vdwg.mxu0
        %v270 = vmax.f32 %v268, 0.0
        %v271 = vld [vmem:[%s3] sm:$0xff]
        %v272 = vld [vmem:[%s3 + $0x8] sm:$0xff]
        %v273 = vld [vmem:[%s3 + $0x10] sm:$0xff]
        %v274 = vld [vmem:[%s3 + $0x18] sm:$0xff]
        %v275 = vld [vmem:[%s4] sm:$0xff]
        %v276 = vld [vmem:[%s4 + $0x8] sm:$0xff]
        %v277 = vld [vmem:[%s4 + $0x10] sm:$0xff]
        %v278 = vld [vmem:[%s4 + $0x18] sm:$0xff]
        %vm279 = vcmask 15360
        %v281 = vsel %vm279, %v271, 0
        %v284 = vsel %vm279, %v272, 0
        %v287 = vsel %vm279, %v273, 0
        %v290 = vsel %vm279, %v274, 0
        %vm292 = vcmask 1041408
        %v294 = vsel %vm292, %v270, 0
        %296 = vmatpush.msra.mxu0 0.0
        %297 = vmatpush.msra.mxu0 0.0
        %298 = vmatpush.msra.mxu0 0.0
        %299 = vmatpush.msra.mxu0 0.0
        %300 = vmatpush.msra.mxu0 0.0
        %301 = vmatpush.msra.mxu0 0.0
        %302 = vmatpush.msra.mxu0 0.0
        %303 = vmatpush.msra.mxu0 0.0
        %304 = vmatpush.msra.mxu0 0.0
        %305 = vmatpush.msra.mxu0 0.0
        %306 = vmatpush.msra.mxu0 0.0
        %307 = vmatpush.msra.mxu0 0.0
        %308 = vmatpush.msra.mxu0 0.0
        %309 = vmatpush.msra.mxu0 0.0
        %310 = vmatpush.msra.mxu0 0.0
        %311 = vmatpush.msra.mxu0 %v294
        %312 = vmatmul.f32.gmra.mxu0 %v281
        %v313 = vpop.f32.mrf.mxu0
        %v314 = vadd.f32 %v275, %v313
        %315 = vmatmul.f32.gmra.mxu0 %v284
        %v316 = vpop.f32.mrf.mxu0
        %v317 = vadd.f32 %v276, %v316
        %318 = vmatmul.f32.gmra.mxu0 %v287
        %v319 = vpop.f32.mrf.mxu0
        %v320 = vadd.f32 %v277, %v319
        %321 = vmatmul.f32.gmra.mxu0 %v290
        %v322 = vpop.f32.mrf.mxu0
        %v323 = vadd.f32 %v278, %v322
        %324 = vdwg.mxu0
        %v325 = vxor.u32 %v314, 2147483648
        %v326 = vxor.u32 %v317, 2147483648
        %v327 = vxor.u32 %v320, 2147483648
        %v328 = vxor.u32 %v323, 2147483648
        %v329 = vmul.f32 %v325, 1.442695
        %v330 = vpow.pop %v329
        %v331 = vmul.f32 %v326, 1.442695
        %v332 = vpow.pop %v331
        %v333 = vmul.f32 %v327, 1.442695
        %v334 = vpow.pop %v333
        %v335 = vmul.f32 %v328, 1.442695
        %v336 = vpow.pop %v335
        %v337 = vadd.f32 %v330, 1.0
        %v338 = vadd.f32 %v332, 1.0
        %v339 = vadd.f32 %v334, 1.0
        %v340 = vadd.f32 %v336, 1.0
        %v341 = vrcp.pop %v337
        %v342 = vmul.f32 %v337, %v341
        %v343 = vsub.f32 1.0, %v342
        %v344 = vmul.f32 %v341, %v343
        %v345 = vadd.f32 %v341, %v344
        %vm346 = vweird.f32 %v337
        %vm347 = vweird.f32 %v341
        %vm348 = vmor %vm346, %vm347
        %v349 = vsel %vm348, %v341, %v345
        %v350 = vand.u32 2147483647, %v337
        %vm351 = vcmp.eq.f32.partialorder %v350, 8.507059e+37
        %v352 = vand.u32 %v337, 2147483648
        %v353 = vor.u32 1.1754944e-38, %v352
        %v354 = vsel %vm351, %v353, %v349
        %v355 = vmul.f32 1.0, %v354
        %v356 = vrcp.pop %v338
        %v357 = vmul.f32 %v338, %v356
        %v358 = vsub.f32 1.0, %v357
        %v359 = vmul.f32 %v356, %v358
        %v360 = vadd.f32 %v356, %v359
        %vm361 = vweird.f32 %v338
        %vm362 = vweird.f32 %v356
        %vm363 = vmor %vm361, %vm362
        %v364 = vsel %vm363, %v356, %v360
        %v365 = vand.u32 2147483647, %v338
        %vm366 = vcmp.eq.f32.partialorder %v365, 8.507059e+37
        %v367 = vand.u32 %v338, 2147483648
        %v368 = vor.u32 1.1754944e-38, %v367
        %v369 = vsel %vm366, %v368, %v364
        %v370 = vmul.f32 1.0, %v369
        %v371 = vrcp.pop %v339
        %v372 = vmul.f32 %v339, %v371
        %v373 = vsub.f32 1.0, %v372
        %v374 = vmul.f32 %v371, %v373
        %v375 = vadd.f32 %v371, %v374
        %vm376 = vweird.f32 %v339
        %vm377 = vweird.f32 %v371
        %vm378 = vmor %vm376, %vm377
        %v379 = vsel %vm378, %v371, %v375
        %v380 = vand.u32 2147483647, %v339
        %vm381 = vcmp.eq.f32.partialorder %v380, 8.507059e+37
        %v382 = vand.u32 %v339, 2147483648
        %v383 = vor.u32 1.1754944e-38, %v382
        %v384 = vsel %vm381, %v383, %v379
        %v385 = vmul.f32 1.0, %v384
        %v386 = vrcp.pop %v340
        %v387 = vmul.f32 %v340, %v386
        %v388 = vsub.f32 1.0, %v387
        %v389 = vmul.f32 %v386, %v388
        %v390 = vadd.f32 %v386, %v389
        %vm391 = vweird.f32 %v340
        %vm392 = vweird.f32 %v386
        %vm393 = vmor %vm391, %vm392
        %v394 = vsel %vm393, %v386, %v390
        %v395 = vand.u32 2147483647, %v340
        %vm396 = vcmp.eq.f32.partialorder %v395, 8.507059e+37
        %v397 = vand.u32 %v340, 2147483648
        %v398 = vor.u32 1.1754944e-38, %v397
        %v399 = vsel %vm396, %v398, %v394
        %v400 = vmul.f32 1.0, %v399
        %402 = vset.pattern.permute.xlu0 0
        %403 = vperm.xlu0 %402, %v355
        %v404 = vpop.permute.xlu0 %403
        %407 = vset.pattern.permute.xlu0 0
        %408 = vperm.xlu0 %407, %v370
        %v409 = vpop.permute.xlu0 %408
        %412 = vset.pattern.permute.xlu0 0
        %413 = vperm.xlu0 %412, %v385
        %v414 = vpop.permute.xlu0 %413
        %417 = vset.pattern.permute.xlu0 0
        %418 = vperm.xlu0 %417, %v400
        %v419 = vpop.permute.xlu0 %418
        %v421 = vmul.f32 %v223, %v404
        %v422 = vmul.f32 %v224, %v409
        %v423 = vmul.f32 %v225, %v414
        %v424 = vmul.f32 %v226, %v419
        %425 = vst.msk [vmem:[%s217] sm:$0xff] %vm227, %v421
        %426 = vst.msk [vmem:[%s217 + $0x8] sm:$0xff] %vm227, %v422
        %427 = vst.msk [vmem:[%s217 + $0x10] sm:$0xff] %vm227, %v423
        %428 = vst.msk [vmem:[%s217 + $0x18] sm:$0xff] %vm227, %v424
        %s429 = sand.u32 %s137, 1
        %s430 = scalar_lea.sflag [#allocation3], %s429
        %s431 = sand.u32 %s137, 1
        %s432 = smul.addr %s431, 32
        %s433 = scalar_lea.vmem [#allocation2], %s432
        // Predicated region
        $region41: #{tpu_custom_call.1} parent=39 // pred_check
          %p434 = pneg %p147
        $region42: #{tpu_custom_call.1} parent=39 // pred_check_branch
          %436 = sbr.rel (%p434) target = $region44
        $region43: #{tpu_custom_call.1} parent=39 // pred_region
          %438 = vsyncadd %s430, 0
          %s439 = smul.addr %s19, 4
          %s440 = smul.addr %s439, 8
          %s441 = scalar_lea.hbm %s5, %s440
          %s442 = sshll.u32 %s433, 4
          %s443 = int_to_ptr.vmem [resolvable:$true] %s442
          %s444 = sshll.u32 %s441, 4
          %s445 = int_to_ptr.hbm [resolvable:$true] %s444
          %450 = dma.vmem_to_hbm [thread:$0]  %s443, 512, %s445, %s430, 128, 128, 8
        $region44: #{tpu_custom_call.1} parent=39 // pred_fallthru
          _
      $region40: #{tpu_custom_call.1} parent=5 // pred_fallthru
        _
      %p451 = scmp.le.s32.totalorder 2, %s14
      // Predicated region
      $region45: #{tpu_custom_call.1} parent=5 // pred_check
        %p452 = pneg %p451
      $region46: #{tpu_custom_call.1} parent=5 // pred_check_branch
        %454 = sbr.rel (%p452) target = $region48
      $region47: #{tpu_custom_call.1} parent=5 // pred_region
        %s455 = ssub.s32 %s14, 2
        // Predicated region
        $region49: #{tpu_custom_call.1} parent=47 // pred_check
          %p456 = pneg %p153
        $region50: #{tpu_custom_call.1} parent=47 // pred_check_branch
          %458 = sbr.rel (%p456) target = $region52
        $region51: #{tpu_custom_call.1} parent=47 // pred_region
          %s459 = sand.u32 %s138, 1
          %s460 = scalar_lea.sflag [#allocation3], %s459
          %s461 = sand.u32 %s138, 1
          %s462 = smul.addr %s461, 32
          %s463 = scalar_lea.vmem [#allocation2], %s462
          %465 = dma.done %s460, 512
        $region52: #{tpu_custom_call.1} parent=47 // pred_fallthru
          _
      $region48: #{tpu_custom_call.1} parent=5 // pred_fallthru
        _
    $region6: #{tpu_custom_call.1} parent=1 // loop_footer
      %s18 = sadd.s32 1, %s14
    $region7: #{tpu_custom_call.1} parent=1 // loop_footer_branch
      %13 = sbr.rel target = $region3
    $region8: #{tpu_custom_call.1} parent=1 // loop_exit
      _
    %466 = vsyncpa [#allocation3], 1
    %s467 = scalar_lea.sflag [#allocation3], 1
    %468 = vsyncpa %s467, 1

</llo_original>
